<compile_context>
chip_gen: v7x
topology: tpu7x:2x2x1
jax: 0.10.0
libtpu: 0.0.40
codegen_flags: <defaults>
</compile_context>

<pallas_src>
import functools

import jax
import jax.numpy as jnp
from jax.experimental import pallas as pl
from jax.experimental.pallas import tpu as pltpu


def _focal_loss_kernel(x0_ref, x1_ref, t_ref, *out_refs, gamma, alpha,
                       n_full_rows, n_rem, needs_mask, num_tiles, block_rows,
                       with_logpt):
    if with_logpt:
        lp0_ref, lp1_ref, part_ref = out_refs
    else:
        (part_ref,) = out_refs

    x0 = x0_ref[...].astype(jnp.float32)      # (TN, 128) class-0 logits
    x1 = x1_ref[...].astype(jnp.float32)      # (TN, 128) class-1 logits
    t = t_ref[...].astype(jnp.int32)          # (TN, 128) targets (0/1)

    # 2-class log_softmax with ONE exp and ONE log (EUP-light), no XLU reduce:
    #   m   = max(x0, x1); d = |x0 - x1|
    #   lse = m + log(1 + exp(-d))
    m = jnp.maximum(x0, x1)
    d = jnp.abs(x0 - x1)
    e = jnp.exp(-d)                            # exp(min - max), in (0, 1]
    denom = 1.0 + e
    lse = m + jnp.log(denom)
    if with_logpt:
        lp0_ref[...] = (x0 - lse).astype(lp0_ref.dtype)
        lp1_ref[...] = (x1 - lse).astype(lp1_ref.dtype)

    # gather(1, target) over 2 classes == lane-wise select (pure VPU).
    is0 = (t == 0)
    x_t = jnp.where(is0, x0, x1)
    logpt = x_t - lse
    # pt = exp(logpt) without a second EUP exp:
    #   target class is the max  -> pt = 1 / (1 + e)
    #   target class is the min  -> pt = e / (1 + e)
    pt = jnp.where(x_t == m, jnp.float32(1.0), e) / denom
    at = jnp.where(is0, jnp.float32(alpha), jnp.float32(1.0 - alpha))

    u = 1.0 - pt
    g_int = int(gamma) if float(gamma) == float(int(gamma)) else None
    if g_int is not None and 0 <= g_int <= 8:
        # integer gamma -> repeated multiplies (no EUP pow, no 0*inf NaN risk)
        w = jnp.ones_like(u)
        for _ in range(g_int):
            w = w * u
    else:
        # float-gamma fallback; guard u == 0 so 0 * (-inf) cannot produce NaN.
        w = jnp.where(u > 0.0,
                      jnp.power(jnp.maximum(u, jnp.float32(1e-30)),
                                jnp.float32(gamma)),
                      0.0)

    loss = -1.0 * w * (logpt * at)             # (TN, 128)

    def tile_sum(v):
        # sublane-only reduce -> lane-dense (1, 1, 128) partial-sum row.
        return jnp.sum(v, axis=0, keepdims=True).reshape(1, 1, 128)

    if needs_mask:
        # All padded elements live in the LAST tile; interior tiles skip the
        # mask work entirely (saves VPU + elementwise VMEM temporaries).
        is_last = pl.program_id(0) == (num_tiles - 1)

        @pl.when(is_last)
        def _():
            base = (num_tiles - 1) * block_rows
            rows = jax.lax.broadcasted_iota(jnp.int32, loss.shape, 0) + base
            lanes = jax.lax.broadcasted_iota(jnp.int32, loss.shape, 1)
            # overflow-safe "flat index < n": row/lane compare, no row*128.
            valid = (rows < n_full_rows) | ((rows == n_full_rows) &
                                            (lanes < n_rem))
            part_ref[...] = tile_sum(jnp.where(valid, loss, 0.0))

        @pl.when(jnp.logical_not(is_last))
        def _():
            part_ref[...] = tile_sum(loss)
    else:
        part_ref[...] = tile_sum(loss)


def _round_up(a, b):
    return -(-a // b) * b


def focal_loss(x, target, *, gamma=2, alpha=0.25, size_average=True,
               block_rows=2048, return_logpt=True):
    """Pallas implementation of FocalLoss.forward.

    Returns (loss, logpt_org) matching the PyTorch module:
      loss      : scalar float32
      logpt_org : (N, 2) log-softmax of the flattened logits (in x.dtype),
                  or None when return_logpt=False (loss-only fast path).
    """
    # --- extract the two class planes (no (N, C) interleaving transpose) ---
    if x.ndim > 2:
        b, c = x.shape[0], x.shape[1]
        x3 = x.reshape(b, c, -1)              # metadata-only reshape of NCHW
        col0 = x3[:, 0, :].reshape(-1)        # contiguous per-batch slabs
        col1 = x3[:, 1, :].reshape(-1)
    else:
        c = x.shape[1]
        col0 = x[:, 0]
        col1 = x[:, 1]
    assert c == 2, "FocalLoss alpha gather assumes exactly 2 classes"
    t_flat = target.reshape(-1).astype(jnp.int8)     # 0/1 -> 1 B/elem in HBM
    n = col0.shape[0]
    out_dtype = x.dtype

    # --- lane-dense (R, 128) planes, padded to a whole number of tiles ---
    r_raw = -(-n // 128)                               # ceil(n / 128)
    # TN multiple of 32 (int8 (32,128) tiling), <= block_rows.
    tn = _round_up(min(block_rows, max(r_raw, 1)), 32)
    # keep the grid >= 2 tiles when there is enough data (v7x: 2 TensorCores)
    if r_raw > 64 and _round_up(r_raw, tn) // tn < 2:
        tn = _round_up(-(-r_raw // 2), 32)
    r = _round_up(r_raw, tn)                           # padded row count
    n_pad = r * 128
    num_tiles = r // tn

    def plane(v):                                      # keep source dtype
        v = jnp.pad(v, (0, n_pad - n))
        return v.reshape(r, 128)

    x0p = plane(col0)
    x1p = plane(col1)
    tp = plane(t_flat)

    kernel = functools.partial(
        _focal_loss_kernel, gamma=gamma, alpha=alpha,
        n_full_rows=n // 128, n_rem=n % 128, needs_mask=(n != n_pad),
        num_tiles=num_tiles, block_rows=tn, with_logpt=return_logpt)

    row_spec = pl.BlockSpec((tn, 128), lambda i: (i, 0))
    out_specs = []
    out_shapes = []
    if return_logpt:
        out_specs += [pl.BlockSpec((tn, 128), lambda i: (i, 0)),
                      pl.BlockSpec((tn, 128), lambda i: (i, 0))]
        out_shapes += [jax.ShapeDtypeStruct((r, 128), out_dtype),
                       jax.ShapeDtypeStruct((r, 128), out_dtype)]
    out_specs.append(pl.BlockSpec((1, 1, 128), lambda i: (i, 0, 0)))
    out_shapes.append(jax.ShapeDtypeStruct((num_tiles, 1, 128), jnp.float32))

    results = pl.pallas_call(
        kernel,
        grid=(num_tiles,),
        in_specs=[row_spec, row_spec, row_spec],
        out_specs=tuple(out_specs),
        out_shape=tuple(out_shapes),
        compiler_params=pltpu.CompilerParams(
            dimension_semantics=("parallel",),
            # let XLA fuse the slice/pad/reshape producers into the call so
            # the class planes are not re-materialized in HBM first.
            allow_input_fusion=[True, True, True],
            # v5e default scoped VMEM is 16 MiB; ~1 MiB blocks x 5 streams x 2
            # buffers + temporaries needs more.  32 MiB is safe on v5e/v6e/v7x.
            vmem_limit_bytes=32 * 1024 * 1024),
    )(x0p, x1p, tp)

    if return_logpt:
        lp0, lp1, part = results
    else:
        (part,) = results
        lp0 = lp1 = None

    loss = jnp.sum(part)
    if size_average:
        loss = loss / jnp.float32(n)          # divide by the GLOBAL N

    if not return_logpt:
        return loss, None

    # Interleave the two lane-dense planes back to the (N, 2) module layout.
    # TODO(synk): loss-only callers should pass return_logpt=False and skip this.
    logpt_org = jnp.stack([lp0.reshape(-1)[:n], lp1.reshape(-1)[:n]], axis=-1)
    return loss, logpt_org


def _focal_loss_ref(x, target, *, gamma=2, alpha=0.25, size_average=True):
    """Pure-JAX reference for correctness checking."""
    if x.ndim > 2:
        b, c = x.shape[0], x.shape[1]
        x = jnp.transpose(x.reshape(b, c, -1), (0, 2, 1)).reshape(-1, c)
    t = target.reshape(-1).astype(jnp.int32)
    logp = jax.nn.log_softmax(x, axis=-1)
    logpt = jnp.take_along_axis(logp, t[:, None], axis=1)[:, 0]
    pt = jnp.exp(logpt)
    alpha_vec = jnp.array([alpha, 1.0 - alpha], dtype=x.dtype)
    at = alpha_vec[t]
    logpt_w = logpt * at
    loss = -1.0 * (1.0 - pt) ** gamma * logpt_w
    loss = loss.mean() if size_average else loss.sum()
    return loss, logp


if __name__ == "__main__":
    key = jax.random.PRNGKey(0)
    k1, k2 = jax.random.split(key)

    # Binary-class NCHW logits like a segmentation head:
    # (B=2, C=2, H=16, W=16) -> N = 2*16*16 = 512 rows.
    x = jax.random.normal(k1, (2, 2, 16, 16), dtype=jnp.float32)
    target = jax.random.randint(k2, (2, 16, 16), 0, 2, dtype=jnp.int32)

    loss, logpt_org = focal_loss(x, target, gamma=2, alpha=0.25,
                                 size_average=True)
    jax.block_until_ready((loss, logpt_org))

    # sanity check against pure-JAX reference (silent on success)
    loss_ref, logp_ref = _focal_loss_ref(x, target, gamma=2, alpha=0.25,
                                         size_average=True)
    assert jnp.allclose(loss, loss_ref, atol=1e-5, rtol=1e-5)
    assert jnp.allclose(logpt_org, logp_ref, atol=1e-5, rtol=1e-5)

    # also exercise the loss-only fast path (no log-softmax outputs)
    loss2, _ = focal_loss(x, target, gamma=2, alpha=0.25, size_average=True,
                          return_logpt=False)
    jax.block_until_ready(loss2)
    assert jnp.allclose(loss2, loss_ref, atol=1e-5, rtol=1e-5)

    print("KERNEL_OK")
</pallas_src>

<mosaic_0001>
module attributes {stable_mosaic.version = 11 : i64} {
  func.func @_focal_loss_kernel(%arg0: i32, %arg1: memref<32x128xf32, #tpu.memory_space<vmem>>, %arg2: memref<32x128xf32, #tpu.memory_space<vmem>>, %arg3: memref<32x128xi8, #tpu.memory_space<vmem>>, %arg4: memref<32x128xf32, #tpu.memory_space<vmem>>, %arg5: memref<32x128xf32, #tpu.memory_space<vmem>>, %arg6: memref<1x1x128xf32, #tpu.memory_space<vmem>>) attributes {dimension_semantics = [#tpu.dimension_semantics<parallel>], iteration_bounds = array<i64: 1>, scalar_prefetch = 0 : i64, scratch_operands = 0 : i64, tpu.core_type = #tpu.core_type<tc>, window_params = [{transform_indices = @transform_0, window_bounds = array<i64: 32, 128>}, {transform_indices = @transform_1, window_bounds = array<i64: 32, 128>}, {transform_indices = @transform_2, window_bounds = array<i64: 32, 128>}, {transform_indices = @transform_3, window_bounds = array<i64: 32, 128>}, {transform_indices = @transform_4, window_bounds = array<i64: 32, 128>}, {transform_indices = @transform_5, window_bounds = array<i64: 1, 1, 128>}]} {
    %c0 = arith.constant 0 : index
    %c0_0 = arith.constant 0 : index
    %0 = vector.load %arg1[%c0, %c0_0] : memref<32x128xf32, #tpu.memory_space<vmem>>, vector<32x128xf32>
    %c0_1 = arith.constant 0 : index
    %c0_2 = arith.constant 0 : index
    %1 = vector.load %arg2[%c0_1, %c0_2] : memref<32x128xf32, #tpu.memory_space<vmem>>, vector<32x128xf32>
    %c0_3 = arith.constant 0 : index
    %c0_4 = arith.constant 0 : index
    %2 = vector.load %arg3[%c0_3, %c0_4] : memref<32x128xi8, #tpu.memory_space<vmem>>, vector<32x128xi8>
    %3 = arith.extsi %2 : vector<32x128xi8> to vector<32x128xi32>
    %4 = arith.maximumf %0, %1 : vector<32x128xf32>
    %5 = arith.subf %0, %1 : vector<32x128xf32>
    %6 = math.absf %5 : vector<32x128xf32>
    %cst = arith.constant 0.000000e+00 : f32
    %7 = vector.broadcast %cst : f32 to vector<32x128xf32>
    %8 = arith.subf %7, %6 : vector<32x128xf32>
    %9 = math.exp %8 : vector<32x128xf32>
    %cst_5 = arith.constant 1.000000e+00 : f32
    %10 = vector.broadcast %cst_5 : f32 to vector<32x128xf32>
    %11 = arith.addf %10, %9 : vector<32x128xf32>
    %12 = math.log %11 : vector<32x128xf32>
    %13 = arith.addf %4, %12 : vector<32x128xf32>
    %14 = arith.subf %0, %13 : vector<32x128xf32>
    %c0_6 = arith.constant 0 : index
    %c0_7 = arith.constant 0 : index
    %15 = vector.load %arg4[%c0_6, %c0_7] : memref<32x128xf32, #tpu.memory_space<vmem>>, vector<32x128xf32>
    tpu.vector_store %arg4[%c0_6, %c0_7], %14 {strides = array<i32>} : memref<32x128xf32, #tpu.memory_space<vmem>>, vector<32x128xf32>,
    %16 = arith.subf %1, %13 : vector<32x128xf32>
    %c0_8 = arith.constant 0 : index
    %c0_9 = arith.constant 0 : index
    %17 = vector.load %arg5[%c0_8, %c0_9] : memref<32x128xf32, #tpu.memory_space<vmem>>, vector<32x128xf32>
    tpu.vector_store %arg5[%c0_8, %c0_9], %16 {strides = array<i32>} : memref<32x128xf32, #tpu.memory_space<vmem>>, vector<32x128xf32>,
    %c0_i32 = arith.constant 0 : i32
    %18 = vector.broadcast %c0_i32 : i32 to vector<32x128xi32>
    %19 = arith.cmpi eq, %3, %18 : vector<32x128xi32>
    %20 = arith.select %19, %0, %1 : vector<32x128xi1>, vector<32x128xf32>
    %21 = arith.subf %20, %13 : vector<32x128xf32>
    %22 = arith.cmpf oeq, %20, %4 : vector<32x128xf32>
    %cst_10 = arith.constant 1.000000e+00 : f32
    %23 = vector.broadcast %cst_10 : f32 to vector<32x128xf32>
    %24 = arith.select %22, %23, %9 : vector<32x128xi1>, vector<32x128xf32>
    %25 = arith.divf %24, %11 : vector<32x128xf32>
    %cst_11 = arith.constant 2.500000e-01 : f32
    %cst_12 = arith.constant 7.500000e-01 : f32
    %26 = vector.broadcast %cst_11 : f32 to vector<32x128xf32>
    %27 = vector.broadcast %cst_12 : f32 to vector<32x128xf32>
    %28 = arith.select %19, %26, %27 : vector<32x128xi1>, vector<32x128xf32>
    %cst_13 = arith.constant 1.000000e+00 : f32
    %29 = vector.broadcast %cst_13 : f32 to vector<32x128xf32>
    %30 = arith.subf %29, %25 : vector<32x128xf32>
    %cst_14 = arith.constant 1.000000e+00 : f32
    %31 = vector.broadcast %cst_14 : f32 to vector<32x128xf32>
    %32 = arith.mulf %31, %30 : vector<32x128xf32>
    %33 = arith.mulf %32, %30 : vector<32x128xf32>
    %cst_15 = arith.constant -1.000000e+00 : f32
    %34 = vector.broadcast %cst_15 : f32 to vector<32x128xf32>
    %35 = arith.mulf %34, %33 : vector<32x128xf32>
    %36 = arith.mulf %21, %28 : vector<32x128xf32>
    %37 = arith.mulf %35, %36 : vector<32x128xf32>
    %c0_i32_16 = arith.constant 0 : i32
    %38 = arith.cmpi eq, %arg0, %c0_i32_16 : i32
    %39 = arith.extui %38 : i1 to i32
    %c0_i32_17 = arith.constant 0 : i32
    %40 = arith.cmpi ne, %39, %c0_i32_17 : i32
    scf.if %40 {
      %44 = tpu.iota {dimensions = array<i32: 0>} : vector<32x128xi32>
      %c0_i32_19 = arith.constant 0 : i32
      %45 = vector.broadcast %c0_i32_19 : i32 to vector<32x128xi32>
      %46 = arith.addi %44, %45 : vector<32x128xi32>
      %47 = tpu.iota {dimensions = array<i32: 1>} : vector<32x128xi32>
      %c4_i32 = arith.constant 4 : i32
      %48 = vector.broadcast %c4_i32 : i32 to vector<32x128xi32>
      %49 = arith.cmpi slt, %46, %48 : vector<32x128xi32>
      %c4_i32_20 = arith.constant 4 : i32
      %50 = vector.broadcast %c4_i32_20 : i32 to vector<32x128xi32>
      %51 = arith.cmpi eq, %46, %50 : vector<32x128xi32>
      %c0_i32_21 = arith.constant 0 : i32
      %52 = vector.broadcast %c0_i32_21 : i32 to vector<32x128xi32>
      %53 = arith.cmpi slt, %47, %52 : vector<32x128xi32>
      %54 = arith.andi %51, %53 : vector<32x128xi1>
      %55 = arith.ori %49, %54 : vector<32x128xi1>
      %cst_22 = arith.constant 0.000000e+00 : f32
      %56 = vector.broadcast %cst_22 : f32 to vector<32x128xf32>
      %57 = arith.select %55, %37, %56 : vector<32x128xi1>, vector<32x128xf32>
      %cst_23 = arith.constant dense<0.000000e+00> : vector<128xf32>
      %58 = vector.multi_reduction <add>, %57, %cst_23 [0] : vector<32x128xf32> to vector<128xf32>
      %59 = vector.shape_cast %58 : vector<128xf32> to vector<1x128xf32>
      %60 = vector.shape_cast %59 : vector<1x128xf32> to vector<1x1x128xf32>
      %c0_24 = arith.constant 0 : index
      %c0_25 = arith.constant 0 : index
      %c0_26 = arith.constant 0 : index
      %61 = vector.load %arg6[%c0_24, %c0_25, %c0_26] : memref<1x1x128xf32, #tpu.memory_space<vmem>>, vector<1x1x128xf32>
      tpu.vector_store %arg6[%c0_24, %c0_25, %c0_26], %60 {strides = array<i32>} : memref<1x1x128xf32, #tpu.memory_space<vmem>>, vector<1x1x128xf32>,
    } else {
    }
    %true = arith.constant true
    %41 = arith.xori %38, %true : i1
    %42 = arith.extui %41 : i1 to i32
    %c0_i32_18 = arith.constant 0 : i32
    %43 = arith.cmpi ne, %42, %c0_i32_18 : i32
    scf.if %43 {
      %cst_19 = arith.constant dense<0.000000e+00> : vector<128xf32>
      %44 = vector.multi_reduction <add>, %37, %cst_19 [0] : vector<32x128xf32> to vector<128xf32>
      %45 = vector.shape_cast %44 : vector<128xf32> to vector<1x128xf32>
      %46 = vector.shape_cast %45 : vector<1x128xf32> to vector<1x1x128xf32>
      %c0_20 = arith.constant 0 : index
      %c0_21 = arith.constant 0 : index
      %c0_22 = arith.constant 0 : index
      %47 = vector.load %arg6[%c0_20, %c0_21, %c0_22] : memref<1x1x128xf32, #tpu.memory_space<vmem>>, vector<1x1x128xf32>
      tpu.vector_store %arg6[%c0_20, %c0_21, %c0_22], %46 {strides = array<i32>} : memref<1x1x128xf32, #tpu.memory_space<vmem>>, vector<1x1x128xf32>,
    } else {
    }
    return
  }
  func.func @transform_0(%arg0: i32) -> (i32, i32) {
    %c0_i32 = arith.constant 0 : i32
    %c0_i32_0 = arith.constant 0 : i32
    return %arg0, %c0_i32 : i32, i32
  }
  func.func @transform_1(%arg0: i32) -> (i32, i32) {
    %c0_i32 = arith.constant 0 : i32
    %c0_i32_0 = arith.constant 0 : i32
    return %arg0, %c0_i32 : i32, i32
  }
  func.func @transform_2(%arg0: i32) -> (i32, i32) {
    %c0_i32 = arith.constant 0 : i32
    %c0_i32_0 = arith.constant 0 : i32
    return %arg0, %c0_i32 : i32, i32
  }
  func.func @transform_3(%arg0: i32) -> (i32, i32) {
    %c0_i32 = arith.constant 0 : i32
    %c0_i32_0 = arith.constant 0 : i32
    return %arg0, %c0_i32 : i32, i32
  }
  func.func @transform_4(%arg0: i32) -> (i32, i32) {
    %c0_i32 = arith.constant 0 : i32
    %c0_i32_0 = arith.constant 0 : i32
    return %arg0, %c0_i32 : i32, i32
  }
  func.func @transform_5(%arg0: i32) -> (i32, i32, i32) {
    %c0_i32 = arith.constant 0 : i32
    %c0_i32_0 = arith.constant 0 : i32
    %c0_i32_1 = arith.constant 0 : i32
    return %arg0, %c0_i32, %c0_i32_0 : i32, i32, i32
  }
}

</mosaic_0001>

<llo_original>
// kernel: tpu_custom_call.1
$region0: #{tpu_custom_call.1}
  #allocation0 [shape = 'u32[]', space=smem, size = 0x4, offset = 0x4, fixed_abs, tag = 'smem constant byte address 0x4 - core index']
  #allocation1 [shape = 'u32[144,128]{1,0:T(1,128)}', space=vmem, size = 0x12000, scoped, tag = 'internal scratch']
  %s0 = inlined_call_operand.hbm [shape: f32[32,128], index: 0, kind: input, shape index: {}]
  %s1 = inlined_call_operand.hbm [shape: f32[32,128], index: 1, kind: input, shape index: {}]
  %s2 = inlined_call_operand.hbm [shape: s8[32,128], index: 2, kind: input, shape index: {}]
  %s3 = inlined_call_operand.hbm [shape: f32[32,128], index: 3, kind: output, shape index: {0}]
  %s4 = inlined_call_operand.hbm [shape: f32[32,128], index: 4, kind: output, shape index: {1}]
  %s5 = inlined_call_operand.hbm [shape: f32[1,1,128], index: 5, kind: output, shape index: {2}]
  %6 = xla_tuple %s3, %s4, %s5
  %s7 = sld [smem:[#allocation0]]
  $region58: #{tpu_custom_call.1} parent=0
    _
  %s9 = ssub.s32 1, %s7
  %s10 = scalar_select 0, %s9, %s7
  $region1: #{tpu_custom_call.1} parent=0
    #allocation2 [shape = 'u8[16384]{0}', space=vmem, size = 0x4000, scoped, tag = 'input window, operand 0, single buffered']
    #allocation3 [shape = 's32[1]{0}', space=sflag, size = 0x4, scoped, tag = 'scoped memory for tpu_custom_call.1']
    #allocation4 [shape = 's32[1]{0}', space=sflag, size = 0x4, scoped, tag = 'scoped memory for tpu_custom_call.1']
    #allocation5 [shape = 'u8[16384]{0}', space=vmem, size = 0x4000, scoped, tag = 'input window, operand 1, single buffered']
    #allocation6 [shape = 's32[1]{0}', space=sflag, size = 0x4, scoped, tag = 'scoped memory for tpu_custom_call.1']
    #allocation7 [shape = 'u8[4096]{0}', space=vmem, size = 0x1000, scoped, tag = 'input window, operand 2, single buffered']
    #allocation8 [shape = 'u8[16384]{0}', space=vmem, size = 0x4000, scoped, tag = 'output window, operand 0, single buffered']
    #allocation9 [shape = 'u8[16384]{0}', space=vmem, size = 0x4000, scoped, tag = 'output window, operand 1, single buffered']
    #allocation10 [shape = 's32[1]{0}', space=sflag, size = 0x4, scoped, tag = 'scoped memory for tpu_custom_call.1']
    #allocation11 [shape = 'u8[512]{0}', space=vmem, size = 0x400, scoped, tag = 'output window, operand 2, single buffered']
    %11 = vsyncpa [#allocation3], 0
    %12 = vsyncpa [#allocation6], 0
    %13 = vsyncpa [#allocation4], 0
    %14 = vsyncpa [#allocation10], 0
    // Predicated region
    $region2: #{tpu_custom_call.1} parent=1 // pred_check
      _
    $region3: #{tpu_custom_call.1} parent=1 // pred_check_branch
      %16 = sbr.rel (0) target = $region5
    $region4: #{tpu_custom_call.1} parent=1 // pred_region
      %s18 = ssub.s32 512, 512
      %19 = vsyncadd [#allocation3], %s18
      %s20 = sshll.u32 [#allocation2], 4
      %s21 = int_to_ptr.vmem [resolvable:$true] %s20
      %26 = dma.hbm_to_vmem [thread:$0]  %s0, 512, %s21, [#allocation3], 128, 128, 8
    $region5: #{tpu_custom_call.1} parent=1 // pred_fallthru
      _
    // Predicated region
    $region6: #{tpu_custom_call.1} parent=1 // pred_check
      _
    $region7: #{tpu_custom_call.1} parent=1 // pred_check_branch
      %28 = sbr.rel (0) target = $region9
    $region8: #{tpu_custom_call.1} parent=1 // pred_region
      %s30 = ssub.s32 512, 512
      %31 = vsyncadd [#allocation6], %s30
      %s32 = sshll.u32 [#allocation5], 4
      %s33 = int_to_ptr.vmem [resolvable:$true] %s32
      %38 = dma.hbm_to_vmem [thread:$0]  %s1, 512, %s33, [#allocation6], 128, 128, 8
    $region9: #{tpu_custom_call.1} parent=1 // pred_fallthru
      _
    // Predicated region
    $region10: #{tpu_custom_call.1} parent=1 // pred_check
      _
    $region11: #{tpu_custom_call.1} parent=1 // pred_check_branch
      %40 = sbr.rel (0) target = $region13
    $region12: #{tpu_custom_call.1} parent=1 // pred_region
      %s42 = ssub.s32 128, 128
      %43 = vsyncadd [#allocation6], %s42
      %s45 = sshll.u32 [#allocation7], 4
      %s46 = int_to_ptr.vmem [resolvable:$true] %s45
      %48 = dma.hbm_to_vmem [thread:$0]  %s2, 128, %s46, [#allocation6]
    $region13: #{tpu_custom_call.1} parent=1 // pred_fallthru
      _
    // Predicated region
    $region14: #{tpu_custom_call.1} parent=1 // pred_check
      _
    $region15: #{tpu_custom_call.1} parent=1 // pred_check_branch
      %50 = sbr.rel (0) target = $region17
    $region16: #{tpu_custom_call.1} parent=1 // pred_region
      %51 = dma.done [#allocation3], 512
    $region17: #{tpu_custom_call.1} parent=1 // pred_fallthru
      _
    // Predicated region
    $region18: #{tpu_custom_call.1} parent=1 // pred_check
      _
    $region19: #{tpu_custom_call.1} parent=1 // pred_check_branch
      %53 = sbr.rel (0) target = $region21
    $region20: #{tpu_custom_call.1} parent=1 // pred_region
      %54 = dma.done [#allocation6], 512
    $region21: #{tpu_custom_call.1} parent=1 // pred_fallthru
      _
    // Predicated region
    $region22: #{tpu_custom_call.1} parent=1 // pred_check
      _
    $region23: #{tpu_custom_call.1} parent=1 // pred_check_branch
      %56 = sbr.rel (0) target = $region25
    $region24: #{tpu_custom_call.1} parent=1 // pred_region
      %57 = dma.done [#allocation6], 128
    $region25: #{tpu_custom_call.1} parent=1 // pred_fallthru
      _
    %v58 = vld [vmem:[#allocation2] sm:$0xff]
    %v59 = vld [vmem:[#allocation2 + $0x8] sm:$0xff]
    %v60 = vld [vmem:[#allocation2 + $0x10] sm:$0xff]
    %v61 = vld [vmem:[#allocation2 + $0x18] sm:$0xff]
    %v62 = vld [vmem:[#allocation5] sm:$0xff]
    %v63 = vld [vmem:[#allocation5 + $0x8] sm:$0xff]
    %v64 = vld [vmem:[#allocation5 + $0x10] sm:$0xff]
    %v65 = vld [vmem:[#allocation5 + $0x18] sm:$0xff]
    %v66 = vld [vmem:[#allocation7] sm:$0xff]
    %v67 = vunpack.c.0.s8 %v66
    %v68 = vunpack.c.1.s8 %v66
    %v69 = vunpack.c.2.s8 %v66
    %v70 = vunpack.c.3.s8 %v66
    %v71 = vmax.f32 %v58, %v62
    %v72 = vmax.f32 %v59, %v63
    %v73 = vmax.f32 %v60, %v64
    %v74 = vmax.f32 %v61, %v65
    %v75 = vsub.f32 %v58, %v62
    %v76 = vsub.f32 %v59, %v63
    %v77 = vsub.f32 %v60, %v64
    %v78 = vsub.f32 %v61, %v65
    %v79 = vand.u32 2147483647, %v75
    %v80 = vand.u32 2147483647, %v76
    %v81 = vand.u32 2147483647, %v77
    %v82 = vand.u32 2147483647, %v78
    %v83 = vsub.f32 0.0, %v79
    %v84 = vsub.f32 0.0, %v80
    %v85 = vsub.f32 0.0, %v81
    %v86 = vsub.f32 0.0, %v82
    %v87 = vmul.f32 %v83, 1.442695
    %v88 = vpow.pop %v87
    %v89 = vmul.f32 %v84, 1.442695
    %v90 = vpow.pop %v89
    %v91 = vmul.f32 %v85, 1.442695
    %v92 = vpow.pop %v91
    %v93 = vmul.f32 %v86, 1.442695
    %v94 = vpow.pop %v93
    %v95 = vadd.f32 %v88, 1.0
    %v96 = vadd.f32 %v90, 1.0
    %v97 = vadd.f32 %v92, 1.0
    %v98 = vadd.f32 %v94, 1.0
    %v99 = vlog2.pop %v95
    %v100 = vmul.f32 %v99, 0.6931472
    %v101 = vlog2.pop %v96
    %v102 = vmul.f32 %v101, 0.6931472
    %v103 = vlog2.pop %v97
    %v104 = vmul.f32 %v103, 0.6931472
    %v105 = vlog2.pop %v98
    %v106 = vmul.f32 %v105, 0.6931472
    %v107 = vadd.f32 %v71, %v100
    %v108 = vadd.f32 %v72, %v102
    %v109 = vadd.f32 %v73, %v104
    %v110 = vadd.f32 %v74, %v106
    %v111 = vsub.f32 %v58, %v107
    %v112 = vsub.f32 %v59, %v108
    %v113 = vsub.f32 %v60, %v109
    %v114 = vsub.f32 %v61, %v110
    %115 = vst [vmem:[#allocation8] sm:$0xff] %v111
    %116 = vst [vmem:[#allocation8 + $0x8] sm:$0xff] %v112
    %117 = vst [vmem:[#allocation8 + $0x10] sm:$0xff] %v113
    %118 = vst [vmem:[#allocation8 + $0x18] sm:$0xff] %v114
    %v119 = vsub.f32 %v62, %v107
    %v120 = vsub.f32 %v63, %v108
    %v121 = vsub.f32 %v64, %v109
    %v122 = vsub.f32 %v65, %v110
    %123 = vst [vmem:[#allocation9] sm:$0xff] %v119
    %124 = vst [vmem:[#allocation9 + $0x8] sm:$0xff] %v120
    %125 = vst [vmem:[#allocation9 + $0x10] sm:$0xff] %v121
    %126 = vst [vmem:[#allocation9 + $0x18] sm:$0xff] %v122
    %vm127 = vcmp.eq.s32.totalorder %v67, 0
    %vm128 = vcmp.eq.s32.totalorder %v68, 0
    %vm129 = vcmp.eq.s32.totalorder %v69, 0
    %vm130 = vcmp.eq.s32.totalorder %v70, 0
    %v131 = vsel %vm127, %v58, %v62
    %v132 = vsel %vm128, %v59, %v63
    %v133 = vsel %vm129, %v60, %v64
    %v134 = vsel %vm130, %v61, %v65
    %v135 = vsub.f32 %v131, %v107
    %v136 = vsub.f32 %v132, %v108
    %v137 = vsub.f32 %v133, %v109
    %v138 = vsub.f32 %v134, %v110
    %vm139 = vcmp.eq.f32.partialorder %v131, %v71
    %vm140 = vcmp.eq.f32.partialorder %v132, %v72
    %vm141 = vcmp.eq.f32.partialorder %v133, %v73
    %vm142 = vcmp.eq.f32.partialorder %v134, %v74
    %v143 = vsel %vm139, 1.0, %v88
    %v144 = vsel %vm140, 1.0, %v90
    %v145 = vsel %vm141, 1.0, %v92
    %v146 = vsel %vm142, 1.0, %v94
    %v147 = vrcp.pop %v95
    %v148 = vmul.f32 %v143, %v147
    %v149 = vrcp.pop %v96
    %v150 = vmul.f32 %v144, %v149
    %v151 = vrcp.pop %v97
    %v152 = vmul.f32 %v145, %v151
    %v153 = vrcp.pop %v98
    %v154 = vmul.f32 %v146, %v153
    %v155 = vsel %vm127, 0.25, 0.75
    %v156 = vsel %vm128, 0.25, 0.75
    %v157 = vsel %vm129, 0.25, 0.75
    %v158 = vsel %vm130, 0.25, 0.75
    %v159 = vsub.f32 1.0, %v148
    %v160 = vsub.f32 1.0, %v150
    %v161 = vsub.f32 1.0, %v152
    %v162 = vsub.f32 1.0, %v154
    %v163 = vmul.f32 %v159, %v159
    %v164 = vmul.f32 %v160, %v160
    %v165 = vmul.f32 %v161, %v161
    %v166 = vmul.f32 %v162, %v162
    %v167 = vmul.f32 %v163, -1.0
    %v168 = vmul.f32 %v164, -1.0
    %v169 = vmul.f32 %v165, -1.0
    %v170 = vmul.f32 %v166, -1.0
    %v171 = vmul.f32 %v135, %v155
    %v172 = vmul.f32 %v136, %v156
    %v173 = vmul.f32 %v137, %v157
    %v174 = vmul.f32 %v138, %v158
    %v175 = vmul.f32 %v167, %v171
    %v176 = vmul.f32 %v168, %v172
    %v177 = vmul.f32 %v169, %v173
    %v178 = vmul.f32 %v170, %v174
    %p179 = scmp.eq.s32.totalorder 0, 0
    // Predicated region
    $region26: #{tpu_custom_call.1} parent=1 // pred_check
      %p180 = pneg %p179
    $region27: #{tpu_custom_call.1} parent=1 // pred_check_branch
      %182 = sbr.rel (%p180) target = $region29
    $region28: #{tpu_custom_call.1} parent=1 // pred_region
      %v183 = vlaneseq
      %v184 = vshrl.u32 %v183, 7
      %v185 = vadd.s32 %v184, 8
      %v186 = vadd.s32 %v184, 16
      %v187 = vadd.s32 %v184, 24
      %v188 = vlaneseq
      %v189 = vand.u32 %v188, 127
      %vm190 = vcmp.lt.s32.totalorder %v184, 4
      %vm191 = vcmp.lt.s32.totalorder %v185, 4
      %vm192 = vcmp.lt.s32.totalorder %v186, 4
      %vm193 = vcmp.lt.s32.totalorder %v187, 4
      %vm194 = vcmp.eq.s32.totalorder %v184, 4
      %vm195 = vcmp.eq.s32.totalorder %v185, 4
      %vm196 = vcmp.eq.s32.totalorder %v186, 4
      %vm197 = vcmp.eq.s32.totalorder %v187, 4
      %vm198 = vcmp.lt.s32.totalorder %v189, 0
      %vm199 = vmand %vm194, %vm198
      %vm200 = vmand %vm195, %vm198
      %vm201 = vmand %vm196, %vm198
      %vm202 = vmand %vm197, %vm198
      %vm203 = vmor %vm190, %vm199
      %vm204 = vmor %vm191, %vm200
      %vm205 = vmor %vm192, %vm201
      %vm206 = vmor %vm193, %vm202
      %v207 = vsel %vm203, %v175, 0.0
      %v208 = vsel %vm204, %v176, 0.0
      %v209 = vsel %vm205, %v177, 0.0
      %v210 = vsel %vm206, %v178, 0.0
      %v211 = vadd.f32 %v207, %v208
      %v212 = vadd.f32 %v211, %v209
      %v213 = vadd.f32 %v212, %v210
      %v214 = vrot.slane %v213, 4
      %v215 = vadd.f32 %v213, %v214
      %v216 = vrot.slane %v215, 2
      %v217 = vadd.f32 %v215, %v216
      %v218 = vrot.slane %v217, 1
      %v219 = vadd.f32 %v217, %v218
      %220 = vst [vmem:[#allocation11] sm:$0x1] %v219
    $region29: #{tpu_custom_call.1} parent=1 // pred_fallthru
      _
    %p221 = scmp.ne.s32.totalorder 0, 0
    // Predicated region
    $region30: #{tpu_custom_call.1} parent=1 // pred_check
      %p222 = pneg %p221
    $region31: #{tpu_custom_call.1} parent=1 // pred_check_branch
      %224 = sbr.rel (%p222) target = $region33
    $region32: #{tpu_custom_call.1} parent=1 // pred_region
      %v225 = vadd.f32 %v175, %v176
      %v226 = vadd.f32 %v225, %v177
      %v227 = vadd.f32 %v226, %v178
      %v228 = vrot.slane %v227, 4
      %v229 = vadd.f32 %v227, %v228
      %v230 = vrot.slane %v229, 2
      %v231 = vadd.f32 %v229, %v230
      %v232 = vrot.slane %v231, 1
      %v233 = vadd.f32 %v231, %v232
      %234 = vst [vmem:[#allocation11] sm:$0x1] %v233
    $region33: #{tpu_custom_call.1} parent=1 // pred_fallthru
      _
    // Predicated region
    $region34: #{tpu_custom_call.1} parent=1 // pred_check
      _
    $region35: #{tpu_custom_call.1} parent=1 // pred_check_branch
      %236 = sbr.rel (0) target = $region37
    $region36: #{tpu_custom_call.1} parent=1 // pred_region
      %s238 = ssub.s32 512, 512
      %239 = vsyncadd [#allocation4], %s238
      %s240 = sshll.u32 [#allocation8], 4
      %s241 = int_to_ptr.vmem [resolvable:$true] %s240
      %246 = dma.vmem_to_hbm [thread:$0]  %s241, 512, %s3, [#allocation4], 128, 128, 8
    $region37: #{tpu_custom_call.1} parent=1 // pred_fallthru
      _
    // Predicated region
    $region38: #{tpu_custom_call.1} parent=1 // pred_check
      _
    $region39: #{tpu_custom_call.1} parent=1 // pred_check_branch
      %248 = sbr.rel (0) target = $region41
    $region40: #{tpu_custom_call.1} parent=1 // pred_region
      %s250 = ssub.s32 512, 512
      %251 = vsyncadd [#allocation10], %s250
      %s252 = sshll.u32 [#allocation9], 4
      %s253 = int_to_ptr.vmem [resolvable:$true] %s252
      %258 = dma.vmem_to_hbm [thread:$0]  %s253, 512, %s4, [#allocation10], 128, 128, 8
    $region41: #{tpu_custom_call.1} parent=1 // pred_fallthru
      _
    // Predicated region
    $region42: #{tpu_custom_call.1} parent=1 // pred_check
      _
    $region43: #{tpu_custom_call.1} parent=1 // pred_check_branch
      %260 = sbr.rel (0) target = $region45
    $region44: #{tpu_custom_call.1} parent=1 // pred_region
      %s262 = ssub.s32 16, 16
      %263 = vsyncadd [#allocation10], %s262
      %s265 = sshll.u32 [#allocation11], 4
      %s266 = int_to_ptr.vmem [resolvable:$true] %s265
      %268 = dma.vmem_to_hbm [thread:$0]  %s266, 16, %s5, [#allocation10]
    $region45: #{tpu_custom_call.1} parent=1 // pred_fallthru
      _
    // Predicated region
    $region46: #{tpu_custom_call.1} parent=1 // pred_check
      _
    $region47: #{tpu_custom_call.1} parent=1 // pred_check_branch
      %270 = sbr.rel (0) target = $region49
    $region48: #{tpu_custom_call.1} parent=1 // pred_region
      %271 = dma.done [#allocation4], 512
    $region49: #{tpu_custom_call.1} parent=1 // pred_fallthru
      _
    // Predicated region
    $region50: #{tpu_custom_call.1} parent=1 // pred_check
      _
    $region51: #{tpu_custom_call.1} parent=1 // pred_check_branch
      %273 = sbr.rel (0) target = $region53
    $region52: #{tpu_custom_call.1} parent=1 // pred_region
      %274 = dma.done [#allocation10], 512
    $region53: #{tpu_custom_call.1} parent=1 // pred_fallthru
      _
    // Predicated region
    $region54: #{tpu_custom_call.1} parent=1 // pred_check
      _
    $region55: #{tpu_custom_call.1} parent=1 // pred_check_branch
      %276 = sbr.rel (0) target = $region57
    $region56: #{tpu_custom_call.1} parent=1 // pred_region
      %277 = dma.done [#allocation10], 16
    $region57: #{tpu_custom_call.1} parent=1 // pred_fallthru
      _
    %278 = vsyncpa [#allocation3], 1
    %279 = vsyncpa [#allocation6], 1
    %280 = vsyncpa [#allocation4], 1
    %281 = vsyncpa [#allocation10], 1

</llo_original>
